<compile_context>
chip_gen: v5e
topology: v5e:2x2
jax: 0.10.0
libtpu: 0.0.40
codegen_flags: <defaults>
</compile_context>

<pallas_src>
import functools

import jax
import jax.numpy as jnp
from jax.experimental import pallas as pl
from jax.experimental.pallas import tpu as pltpu


def _round_up(x, m):
    return ((x + m - 1) // m) * m


def _mlp_kernel(*refs, num_layers):
    # refs = (x_ref, w0_ref, ..., w{L-1}_ref, out_ref)
    x_ref = refs[0]
    w_refs = refs[1:1 + num_layers]
    o_ref = refs[-1]

    h = x_ref[...]                      # packed activations, bf16 (or f32)
    for li in range(num_layers):
        w = w_refs[li][...]             # block-diagonal packed weight, VMEM resident
        # bf16 x bf16 -> f32 accumulation on the MXU (f32 x f32 when use_bf16=False).
        h = jnp.dot(h, w, preferred_element_type=jnp.float32)
        if li != num_layers - 1:
            # ReLU, then back to the MXU operand dtype for the next layer.
            h = jnp.maximum(h, 0.0).astype(w.dtype)
    # Last matmul already produced the lane-dense packed layout -> unmasked vst.
    o_ref[...] = h.astype(o_ref.dtype)


def _choose_pack(d_out):
    """Rows folded per 128-lane row so the output (and chain) is lane-dense."""
    if 0 < d_out < 128 and 128 % d_out == 0:
        return 128 // d_out
    return 1


def mlp_forward(x, weights, *, tile_n=2048, pack=None, use_bf16=True,
                out_dtype=jnp.float32):
    """Run the bias-free MLP on x.

    x:        [N, n_input_dims] (any float dtype; PyTorch casts to f32).
    weights:  list of [in_features, out_features] f32 arrays.
    tile_n:   logical rows per grid step (sweep knob).
    pack:     rows folded per lane row for the block-diagonal packed chain
              (default: 128 // n_output_dims when that divides; pack=2 may be
              preferable on v5e's 128-deep MXU — exposed here for sweeping).
    use_bf16: bf16 MXU operands with f32 accumulation (default).  Set False
              for exact-PyTorch f32 numerics.
    """
    n, d_in = x.shape
    d_out = weights[-1].shape[1]
    num_layers = len(weights)

    if pack is None:
        pack = _choose_pack(d_out)
    pack = max(1, int(pack))

    compute_dtype = jnp.bfloat16 if use_bf16 else jnp.float32

    # Row alignment: tile rows must be a multiple of pack (for the wrapper
    # reshape) and the packed block must be a multiple of 8 sublanes.
    align = 8 * pack
    tile_n = max(align, (int(tile_n) // align) * align)

    # Grid heuristic: aim for >= 4 grid steps when there is enough work so each
    # v7x TensorCore gets >= 2 software-pipelined steps (DMA/compute overlap).
    # For tiny N a single exposed step is fine (let one core take it).
    target_steps = 4
    if n >= target_steps * align:
        tile_n = min(tile_n, _round_up(pl.cdiv(n, target_steps), align))
    else:
        tile_n = min(tile_n, _round_up(n, align))

    grid_n = pl.cdiv(n, tile_n)
    n_pad = grid_n * tile_n

    # One-time cast in the wrapper (halves input HBM traffic in the bf16 path).
    x = x.astype(compute_dtype)
    if n_pad != n:
        # Zero rows flow through the bias-free net to zero outputs; sliced off below.
        x = jnp.pad(x, ((0, n_pad - n), (0, 0)))
    # Row-major reshape: pack `pack` consecutive logical rows into one lane row.
    x_packed = x.reshape(n_pad // pack, d_in * pack)

    # Block-diagonal weights built once in the wrapper (and cast once):
    #   packed_h @ kron(I_pack, W) == concat_j(h_j @ W)   (row-major packing).
    eye = jnp.eye(pack, dtype=compute_dtype)
    w_packed = [jnp.kron(eye, w.astype(compute_dtype)) for w in weights]

    tile_rows = tile_n // pack
    in_specs = [pl.BlockSpec((tile_rows, d_in * pack), lambda i: (i, 0))]
    # Weights: full arrays, constant block index -> resident in VMEM across steps.
    for w in w_packed:
        in_specs.append(pl.BlockSpec(w.shape, lambda i: (0, 0)))

    out_cols = d_out * pack
    out_shape = jax.ShapeDtypeStruct((n_pad // pack, out_cols), out_dtype)
    out_spec = pl.BlockSpec((tile_rows, out_cols), lambda i: (i, 0))

    kernel = functools.partial(_mlp_kernel, num_layers=num_layers)

    out = pl.pallas_call(
        kernel,
        out_shape=out_shape,
        grid_spec=pltpu.PrefetchScalarGridSpec(
            num_scalar_prefetch=0,
            grid=(grid_n,),
            in_specs=in_specs,
            out_specs=out_spec,
        ),
        compiler_params=pltpu.CompilerParams(
            dimension_semantics=("parallel",)),
    )(x_packed, *w_packed)

    # Reshape back to logical rows, THEN slice off padding (order matters).
    out = out.reshape(n_pad, d_out)
    if n_pad != n:
        out = out[:n]
    return out


def init_mlp_weights(key, cfg):
    """Deterministic kaiming_uniform_ (relu) init, matching PyTorch fan_in convention.

    Returns weights in [in, out] layout (transpose of PyTorch's [out, in])."""
    dims = ([cfg["n_input_dims"]]
            + [cfg["n_neurons"]] * cfg["n_hidden_layers"]
            + [cfg["n_output_dims"]])
    weights = []
    for li in range(len(dims) - 1):
        fan_in, fan_out = dims[li], dims[li + 1]
        bound = (6.0 / fan_in) ** 0.5  # gain=sqrt(2), bound = gain*sqrt(3/fan_in)
        key, sub = jax.random.split(key)
        w = jax.random.uniform(sub, (fan_in, fan_out),
                               minval=-bound, maxval=bound, dtype=jnp.float32)
        weights.append(w)
    return weights


def mlp_reference(x, weights, compute_dtype=jnp.float32):
    """Pure-JAX reference; compute_dtype=bf16 emulates the bf16-operand path."""
    h = x.astype(compute_dtype)
    for li, w in enumerate(weights):
        h = jnp.dot(h, w.astype(compute_dtype), preferred_element_type=jnp.float32)
        if li != len(weights) - 1:
            h = jnp.maximum(h, 0.0).astype(compute_dtype)
    return h


# TODO(synk): loss_scale backward-hook has no forward-pass equivalent; forward only.

if __name__ == "__main__":
    cfg = {
        "n_input_dims": 32,
        "n_neurons": 64,
        "n_hidden_layers": 2,   # -> 3 Linear layers total
        "n_output_dims": 32,
    }
    N = 1000  # not a tile multiple: exercises padding + a 4-step parallel grid

    key = jax.random.PRNGKey(0)
    kx, kw = jax.random.split(key)
    x = jax.random.normal(kx, (N, cfg["n_input_dims"]), dtype=jnp.float32)
    weights = init_mlp_weights(kw, cfg)

    # Default path: bf16 MXU operands, f32 accumulation, packed chain.
    out = mlp_forward(x, weights)
    out = jax.block_until_ready(out)
    assert out.shape == (N, cfg["n_output_dims"])
    assert out.dtype == jnp.float32
    ref_bf16 = mlp_reference(x, weights, compute_dtype=jnp.bfloat16)
    assert jnp.allclose(out, ref_bf16, atol=1e-2, rtol=1e-2), \
        "bf16 path mismatch vs bf16-emulated reference"

    # f32 path: matches PyTorch f32 numerics tightly.
    out_f32 = mlp_forward(x, weights, use_bf16=False)
    out_f32 = jax.block_until_ready(out_f32)
    ref = mlp_reference(x, weights)
    assert jnp.allclose(out_f32, ref, atol=1e-5, rtol=1e-5), \
        "f32 path mismatch vs f32 reference"

    print("KERNEL_OK")
</pallas_src>

<mosaic_0001>
module attributes {stable_mosaic.version = 11 : i64} {
  func.func @_mlp_kernel(%arg0: i32, %arg1: memref<64x128xbf16, #tpu.memory_space<vmem>>, %arg2: memref<128x256xbf16, #tpu.memory_space<vmem>>, %arg3: memref<256x256xbf16, #tpu.memory_space<vmem>>, %arg4: memref<256x128xbf16, #tpu.memory_space<vmem>>, %arg5: memref<64x128xf32, #tpu.memory_space<vmem>>) attributes {dimension_semantics = [#tpu.dimension_semantics<parallel>], iteration_bounds = array<i64: 4>, scalar_prefetch = 0 : i64, scratch_operands = 0 : i64, tpu.core_type = #tpu.core_type<tc>, window_params = [{transform_indices = @transform_0, window_bounds = array<i64: 64, 128>}, {pipeline_mode = #tpu.pipeline_mode<synchronous>, transform_indices = @transform_1, window_bounds = array<i64: 128, 256>}, {pipeline_mode = #tpu.pipeline_mode<synchronous>, transform_indices = @transform_2, window_bounds = array<i64: 256, 256>}, {pipeline_mode = #tpu.pipeline_mode<synchronous>, transform_indices = @transform_3, window_bounds = array<i64: 256, 128>}, {transform_indices = @transform_4, window_bounds = array<i64: 64, 128>}]} {
    %c0 = arith.constant 0 : index
    %c0_0 = arith.constant 0 : index
    %0 = vector.load %arg1[%c0, %c0_0] : memref<64x128xbf16, #tpu.memory_space<vmem>>, vector<64x128xbf16>
    %c0_1 = arith.constant 0 : index
    %c0_2 = arith.constant 0 : index
    %1 = vector.load %arg2[%c0_1, %c0_2] : memref<128x256xbf16, #tpu.memory_space<vmem>>, vector<128x256xbf16>
    %cst = arith.constant dense<0.000000e+00> : vector<64x256xf32>
    %2 = tpu.matmul %0, %1, %cst {dimension_numbers = #tpu.dot_dimension_numbers<[1], [0], [0], [1], [0, 0, 1, 1], [], []>} : vector<64x128xbf16>, vector<128x256xbf16>, vector<64x256xf32> -> vector<64x256xf32>
    %cst_3 = arith.constant 0.000000e+00 : f32
    %3 = vector.broadcast %cst_3 : f32 to vector<64x256xf32>
    %4 = arith.maximumf %2, %3 : vector<64x256xf32>
    %5 = arith.truncf %4 : vector<64x256xf32> to vector<64x256xbf16>
    %c0_4 = arith.constant 0 : index
    %c0_5 = arith.constant 0 : index
    %6 = vector.load %arg3[%c0_4, %c0_5] : memref<256x256xbf16, #tpu.memory_space<vmem>>, vector<256x256xbf16>
    %cst_6 = arith.constant dense<0.000000e+00> : vector<64x256xf32>
    %7 = tpu.matmul %5, %6, %cst_6 {dimension_numbers = #tpu.dot_dimension_numbers<[1], [0], [0], [1], [0, 0, 1, 1], [], []>} : vector<64x256xbf16>, vector<256x256xbf16>, vector<64x256xf32> -> vector<64x256xf32>
    %cst_7 = arith.constant 0.000000e+00 : f32
    %8 = vector.broadcast %cst_7 : f32 to vector<64x256xf32>
    %9 = arith.maximumf %7, %8 : vector<64x256xf32>
    %10 = arith.truncf %9 : vector<64x256xf32> to vector<64x256xbf16>
    %c0_8 = arith.constant 0 : index
    %c0_9 = arith.constant 0 : index
    %11 = vector.load %arg4[%c0_8, %c0_9] : memref<256x128xbf16, #tpu.memory_space<vmem>>, vector<256x128xbf16>
    %cst_10 = arith.constant dense<0.000000e+00> : vector<64x128xf32>
    %12 = tpu.matmul %10, %11, %cst_10 {dimension_numbers = #tpu.dot_dimension_numbers<[1], [0], [0], [1], [0, 0, 1, 1], [], []>} : vector<64x256xbf16>, vector<256x128xbf16>, vector<64x128xf32> -> vector<64x128xf32>
    %c0_11 = arith.constant 0 : index
    %c0_12 = arith.constant 0 : index
    %13 = vector.load %arg5[%c0_11, %c0_12] : memref<64x128xf32, #tpu.memory_space<vmem>>, vector<64x128xf32>
    tpu.vector_store %arg5[%c0_11, %c0_12], %12 {strides = array<i32>} : memref<64x128xf32, #tpu.memory_space<vmem>>, vector<64x128xf32>,
    return
  }
  func.func @transform_0(%arg0: i32) -> (i32, i32) {
    %c0_i32 = arith.constant 0 : i32
    %c0_i32_0 = arith.constant 0 : i32
    return %arg0, %c0_i32 : i32, i32
  }
  func.func @transform_1(%arg0: i32) -> (i32, i32) {
    %c0_i32 = arith.constant 0 : i32
    %c0_i32_0 = arith.constant 0 : i32
    %c0_i32_1 = arith.constant 0 : i32
    return %c0_i32, %c0_i32_0 : i32, i32
  }
  func.func @transform_2(%arg0: i32) -> (i32, i32) {
    %c0_i32 = arith.constant 0 : i32
    %c0_i32_0 = arith.constant 0 : i32
    %c0_i32_1 = arith.constant 0 : i32
    return %c0_i32, %c0_i32_0 : i32, i32
  }
  func.func @transform_3(%arg0: i32) -> (i32, i32) {
    %c0_i32 = arith.constant 0 : i32
    %c0_i32_0 = arith.constant 0 : i32
    %c0_i32_1 = arith.constant 0 : i32
    return %c0_i32, %c0_i32_0 : i32, i32
  }
  func.func @transform_4(%arg0: i32) -> (i32, i32) {
    %c0_i32 = arith.constant 0 : i32
    %c0_i32_0 = arith.constant 0 : i32
    return %arg0, %c0_i32 : i32, i32
  }
}

</mosaic_0001>

<llo_original>
// kernel: tpu_custom_call.1
$region0: #{tpu_custom_call.1}
  #allocation0 [shape = 'u32[]', space=smem, size = 0x4, offset = 0x4, fixed_abs, tag = 'smem constant byte address 0x4 - core index']
  #allocation1 [shape = 'u32[72,128]{1,0:T(1,128)}', space=vmem, size = 0x9000, scoped, tag = 'internal scratch']
  %s0 = inlined_call_operand.hbm [shape: bf16[256,128], index: 0, kind: input, shape index: {}]
  %s1 = inlined_call_operand.hbm [shape: bf16[128,256], index: 1, kind: input, shape index: {}]
  %s2 = inlined_call_operand.hbm [shape: bf16[256,256], index: 2, kind: input, shape index: {}]
  %s3 = inlined_call_operand.hbm [shape: bf16[256,128], index: 3, kind: input, shape index: {}]
  %s4 = inlined_call_operand.hbm [shape: f32[256,128], index: 4, kind: output, shape index: {}]
  %s5 = sld [smem:[#allocation0]]
  $region65: #{tpu_custom_call.1} parent=0
    _
  %s7 = ssub.s32 1, %s5
  %s8 = scalar_select 0, %s7, %s5
  $region1: #{tpu_custom_call.1} parent=0
    #allocation2 [shape = 'u8[32768]{0}', space=vmem, size = 0x8000, scoped, tag = 'input window, operand 0']
    #allocation3 [shape = 's32[2]{0}', space=sflag, size = 0x8, scoped, tag = 'scoped memory for tpu_custom_call.1']
    #allocation4 [shape = 's32[2]{0}', space=sflag, size = 0x8, scoped, tag = 'scoped memory for tpu_custom_call.1']
    #allocation5 [shape = 'u8[65536]{0}', space=vmem, size = 0x10000, scoped, tag = 'input window, operand 1, single buffered']
    #allocation6 [shape = 's32[1]{0}', space=sflag, size = 0x4, scoped, tag = 'scoped memory for tpu_custom_call.1']
    #allocation7 [shape = 'u8[131072]{0}', space=vmem, size = 0x20000, scoped, tag = 'input window, operand 2, single buffered']
    #allocation8 [shape = 'u8[65536]{0}', space=vmem, size = 0x10000, scoped, tag = 'input window, operand 3, single buffered']
    #allocation9 [shape = 's32[1]{0}', space=sflag, size = 0x4, scoped, tag = 'scoped memory for tpu_custom_call.1']
    #allocation10 [shape = 'u8[65536]{0}', space=vmem, size = 0x10000, scoped, tag = 'output window, operand 0']
    %9 = vsyncpa [#allocation3], 0
    %s10 = scalar_lea.sflag [#allocation3], 1
    %11 = vsyncpa %s10, 0
    %12 = vsyncpa [#allocation6], 0
    %13 = vsyncpa [#allocation9], 0
    %14 = vsyncpa [#allocation4], 0
    %s15 = scalar_lea.sflag [#allocation4], 1
    %16 = vsyncpa %s15, 0
    loop: start=0, step=1, limit=6
    $region2: #{tpu_custom_call.1} parent=1 // loop_pre_header
      _
    $region3: #{tpu_custom_call.1} parent=1 // loop_header
      %s18 = sphi 0, %s22
      %p19 = scmp.ge.s32.totalorder %s18, 6
      %s28 = sphi 0, %s30
      %s31 = sphi 0, %s28
      %s32 = sphi 0, %s31
      %s48 = sphi 0, %s32
      %s52 = sphi 0, %s52
      %s54 = sphi 0, %s52
      %s55 = sphi 0, %s54
      %s69 = sphi 0, %s55
      %s73 = sphi 0, %s73
      %s75 = sphi 0, %s73
      %s76 = sphi 0, %s75
      %s90 = sphi 0, %s76
      %s94 = sphi 0, %s94
      %s96 = sphi 0, %s94
      %s97 = sphi 0, %s96
      %s111 = sphi 0, %s97
      %s117 = sphi 0, %s119
      %s120 = sphi 0, %s117
      %s121 = sphi 0, %s120
      %s137 = sphi 0, %s121
    $region4: #{tpu_custom_call.1} parent=1 // loop_header_branch
      %21 = sbr.rel (%p19) target = $region8
    $region5: #{tpu_custom_call.1} parent=1 // loop_body
      %s23 = ssub.s32 %s18, 1
      %s24 = ssub.s32 %s18, 2
      %s25 = sadd.s32 %s18, 1
      %s26 = ssub.s32 %s18, %s25
      %p27 = scmp.eq.s32.totalorder %s26, 0
      %s29 = sadd.s32 %s28, 1
      %s30 = scalar_select %p27, %s28, %s29
      %p33 = pneg %p27
      %p34 = scmp.eq.s32.totalorder %s18, 3
      %p35 = por %p33, %p34
      %p36 = scmp.ne.s32.totalorder %s28, %s31
      %p37 = scmp.eq.s32.totalorder %s18, 0
      %p38 = por %p36, %p37
      %p39 = scmp.ne.s32.totalorder %s28, %s31
      %p40 = scmp.eq.s32.totalorder %s23, 3
      %p41 = por %p39, %p40
      %p42 = scmp.ne.s32.totalorder %s31, %s32
      %p43 = scmp.eq.s32.totalorder %s23, 0
      %p44 = por %p42, %p43
      %p45 = scmp.ne.s32.totalorder %s31, %s32
      %p46 = scmp.eq.s32.totalorder %s24, 3
      %p47 = por %p45, %p46
      %p49 = scmp.ne.s32.totalorder %s32, %s48
      %p50 = scmp.eq.s32.totalorder %s24, 0
      %p51 = por %p49, %p50
      %s53 = sadd.s32 %s52, 1
      %p56 = scmp.eq.s32.totalorder %s18, 3
      %p57 = scmp.ne.s32.totalorder %s52, %s54
      %p58 = scmp.eq.s32.totalorder %s18, 0
      %p59 = por %p57, %p58
      %p60 = scmp.ne.s32.totalorder %s52, %s54
      %p61 = scmp.eq.s32.totalorder %s23, 3
      %p62 = por %p60, %p61
      %p63 = scmp.ne.s32.totalorder %s54, %s55
      %p64 = scmp.eq.s32.totalorder %s23, 0
      %p65 = por %p63, %p64
      %p66 = scmp.ne.s32.totalorder %s54, %s55
      %p67 = scmp.eq.s32.totalorder %s24, 3
      %p68 = por %p66, %p67
      %p70 = scmp.ne.s32.totalorder %s55, %s69
      %p71 = scmp.eq.s32.totalorder %s24, 0
      %p72 = por %p70, %p71
      %s74 = sadd.s32 %s73, 1
      %p77 = scmp.eq.s32.totalorder %s18, 3
      %p78 = scmp.ne.s32.totalorder %s73, %s75
      %p79 = scmp.eq.s32.totalorder %s18, 0
      %p80 = por %p78, %p79
      %p81 = scmp.ne.s32.totalorder %s73, %s75
      %p82 = scmp.eq.s32.totalorder %s23, 3
      %p83 = por %p81, %p82
      %p84 = scmp.ne.s32.totalorder %s75, %s76
      %p85 = scmp.eq.s32.totalorder %s23, 0
      %p86 = por %p84, %p85
      %p87 = scmp.ne.s32.totalorder %s75, %s76
      %p88 = scmp.eq.s32.totalorder %s24, 3
      %p89 = por %p87, %p88
      %p91 = scmp.ne.s32.totalorder %s76, %s90
      %p92 = scmp.eq.s32.totalorder %s24, 0
      %p93 = por %p91, %p92
      %s95 = sadd.s32 %s94, 1
      %p98 = scmp.eq.s32.totalorder %s18, 3
      %p99 = scmp.ne.s32.totalorder %s94, %s96
      %p100 = scmp.eq.s32.totalorder %s18, 0
      %p101 = por %p99, %p100
      %p102 = scmp.ne.s32.totalorder %s94, %s96
      %p103 = scmp.eq.s32.totalorder %s23, 3
      %p104 = por %p102, %p103
      %p105 = scmp.ne.s32.totalorder %s96, %s97
      %p106 = scmp.eq.s32.totalorder %s23, 0
      %p107 = por %p105, %p106
      %p108 = scmp.ne.s32.totalorder %s96, %s97
      %p109 = scmp.eq.s32.totalorder %s24, 3
      %p110 = por %p108, %p109
      %p112 = scmp.ne.s32.totalorder %s97, %s111
      %p113 = scmp.eq.s32.totalorder %s24, 0
      %p114 = por %p112, %p113
      %s115 = ssub.s32 %s18, %s25
      %p116 = scmp.eq.s32.totalorder %s115, 0
      %s118 = sadd.s32 %s117, 1
      %s119 = scalar_select %p116, %s117, %s118
      %p122 = pneg %p116
      %p123 = scmp.eq.s32.totalorder %s18, 3
      %p124 = por %p122, %p123
      %p125 = scmp.ne.s32.totalorder %s117, %s120
      %p126 = scmp.eq.s32.totalorder %s18, 0
      %p127 = por %p125, %p126
      %p128 = scmp.ne.s32.totalorder %s117, %s120
      %p129 = scmp.eq.s32.totalorder %s23, 3
      %p130 = por %p128, %p129
      %p131 = scmp.ne.s32.totalorder %s120, %s121
      %p132 = scmp.eq.s32.totalorder %s23, 0
      %p133 = por %p131, %p132
      %p134 = scmp.ne.s32.totalorder %s120, %s121
      %p135 = scmp.eq.s32.totalorder %s24, 3
      %p136 = por %p134, %p135
      %p138 = scmp.ne.s32.totalorder %s121, %s137
      %p139 = scmp.eq.s32.totalorder %s24, 0
      %p140 = por %p138, %p139
      %p141 = scmp.le.s32.totalorder 1, %s18
      %p142 = scmp.lt.s32.totalorder %s18, 5
      %p143 = pnand %p141, %p142
      %p144 = pneg %p143
      // Predicated region
      $region9: #{tpu_custom_call.1} parent=5 // pred_check
        _
      $region10: #{tpu_custom_call.1} parent=5 // pred_check_branch
        %146 = sbr.rel (%p143) target = $region12
      $region11: #{tpu_custom_call.1} parent=5 // pred_region
        %s147 = ssub.s32 %s18, 1
        // Predicated region
        $region13: #{tpu_custom_call.1} parent=11 // pred_check
          %p148 = pneg %p65
        $region14: #{tpu_custom_call.1} parent=11 // pred_check_branch
          %150 = sbr.rel (%p148) target = $region16
        $region15: #{tpu_custom_call.1} parent=11 // pred_region
          %152 = vsyncadd [#allocation6], 0
          %s153 = sshll.u32 %s1, 4
          %s154 = int_to_ptr.hbm [resolvable:$true] %s153
          %s155 = sshll.u32 [#allocation5], 4
          %s156 = int_to_ptr.vmem [resolvable:$true] %s155
          %161 = dma.hbm_to_vmem [thread:$0]  %s154, 2048, %s156, [#allocation6], 128, 128, 8
        $region16: #{tpu_custom_call.1} parent=11 // pred_fallthru
          _
        // Predicated region
        $region17: #{tpu_custom_call.1} parent=11 // pred_check
          %p162 = pneg %p86
        $region18: #{tpu_custom_call.1} parent=11 // pred_check_branch
          %164 = sbr.rel (%p162) target = $region20
        $region19: #{tpu_custom_call.1} parent=11 // pred_region
          %166 = vsyncadd [#allocation6], 0
          %s167 = sshll.u32 %s2, 4
          %s168 = int_to_ptr.hbm [resolvable:$true] %s167
          %s169 = sshll.u32 [#allocation7], 4
          %s170 = int_to_ptr.vmem [resolvable:$true] %s169
          %175 = dma.hbm_to_vmem [thread:$0]  %s168, 4096, %s170, [#allocation6], 128, 128, 8
        $region20: #{tpu_custom_call.1} parent=11 // pred_fallthru
          _
        // Predicated region
        $region21: #{tpu_custom_call.1} parent=11 // pred_check
          %p176 = pneg %p107
        $region22: #{tpu_custom_call.1} parent=11 // pred_check_branch
          %178 = sbr.rel (%p176) target = $region24
        $region23: #{tpu_custom_call.1} parent=11 // pred_region
          %180 = vsyncadd [#allocation9], 0
          %s181 = sshll.u32 %s3, 4
          %s182 = int_to_ptr.hbm [resolvable:$true] %s181
          %s183 = sshll.u32 [#allocation8], 4
          %s184 = int_to_ptr.vmem [resolvable:$true] %s183
          %189 = dma.hbm_to_vmem [thread:$0]  %s182, 2048, %s184, [#allocation9], 64, 64, 4
        $region24: #{tpu_custom_call.1} parent=11 // pred_fallthru
          _
      $region12: #{tpu_custom_call.1} parent=5 // pred_fallthru
        _
      %p190 = scmp.lt.s32.totalorder %s18, 4
      // Predicated region
      $region25: #{tpu_custom_call.1} parent=5 // pred_check
        %p191 = pneg %p190
      $region26: #{tpu_custom_call.1} parent=5 // pred_check_branch
        %193 = sbr.rel (%p191) target = $region28
      $region27: #{tpu_custom_call.1} parent=5 // pred_region
        // Predicated region
        $region29: #{tpu_custom_call.1} parent=27 // pred_check
          %p194 = pneg %p38
        $region30: #{tpu_custom_call.1} parent=27 // pred_check_branch
          %196 = sbr.rel (%p194) target = $region32
        $region31: #{tpu_custom_call.1} parent=27 // pred_region
          %s197 = sand.u32 %s28, 1
          %s198 = scalar_lea.sflag [#allocation3], %s197
          %s199 = sand.u32 %s28, 1
          %s200 = smul.addr %s199, 32
          %s201 = scalar_lea.vmem [#allocation2], %s200
          %s202 = smul.u32 8, %s18
          %204 = vsyncadd %s198, 0
          %s205 = smul.addr %s202, 4
          %s206 = scalar_lea.hbm %s0, %s205
          %s207 = sshll.u32 %s206, 4
          %s208 = int_to_ptr.hbm [resolvable:$true] %s207
          %s209 = sshll.u32 %s201, 4
          %s210 = int_to_ptr.vmem [resolvable:$true] %s209
          %215 = dma.hbm_to_vmem [thread:$0]  %s208, 512, %s210, %s198, 64, 64, 4
        $region32: #{tpu_custom_call.1} parent=27 // pred_fallthru
          _
      $region28: #{tpu_custom_call.1} parent=5 // pred_fallthru
        _
      %p216 = scmp.le.s32.totalorder 1, %s18
      %p217 = scmp.lt.s32.totalorder %s18, 5
      %p218 = pnand %p216, %p217
      %p219 = pneg %p218
      // Predicated region
      $region33: #{tpu_custom_call.1} parent=5 // pred_check
        _
      $region34: #{tpu_custom_call.1} parent=5 // pred_check_branch
        %221 = sbr.rel (%p218) target = $region36
      $region35: #{tpu_custom_call.1} parent=5 // pred_region
        %s222 = ssub.s32 %s18, 1
        %s223 = sand.u32 %s31, 1
        %s224 = scalar_lea.sflag [#allocation3], %s223
        %s225 = sand.u32 %s31, 1
        %s226 = smul.addr %s225, 32
        %s227 = scalar_lea.vmem [#allocation2], %s226
        // Predicated region
        $region37: #{tpu_custom_call.1} parent=35 // pred_check
          %p228 = pneg %p44
        $region38: #{tpu_custom_call.1} parent=35 // pred_check_branch
          %230 = sbr.rel (%p228) target = $region40
        $region39: #{tpu_custom_call.1} parent=35 // pred_region
          %232 = dma.done %s224, 512
        $region40: #{tpu_custom_call.1} parent=35 // pred_fallthru
          _
        // Predicated region
        $region41: #{tpu_custom_call.1} parent=35 // pred_check
          %p233 = pneg %p65
        $region42: #{tpu_custom_call.1} parent=35 // pred_check_branch
          %235 = sbr.rel (%p233) target = $region44
        $region43: #{tpu_custom_call.1} parent=35 // pred_region
          %237 = dma.done [#allocation6], 2048
        $region44: #{tpu_custom_call.1} parent=35 // pred_fallthru
          _
        // Predicated region
        $region45: #{tpu_custom_call.1} parent=35 // pred_check
          %p238 = pneg %p86
        $region46: #{tpu_custom_call.1} parent=35 // pred_check_branch
          %240 = sbr.rel (%p238) target = $region48
        $region47: #{tpu_custom_call.1} parent=35 // pred_region
          %242 = dma.done [#allocation6], 4096
        $region48: #{tpu_custom_call.1} parent=35 // pred_fallthru
          _
        // Predicated region
        $region49: #{tpu_custom_call.1} parent=35 // pred_check
          %p243 = pneg %p107
        $region50: #{tpu_custom_call.1} parent=35 // pred_check_branch
          %245 = sbr.rel (%p243) target = $region52
        $region51: #{tpu_custom_call.1} parent=35 // pred_region
          %247 = dma.done [#allocation9], 2048
        $region52: #{tpu_custom_call.1} parent=35 // pred_fallthru
          _
        %s248 = sand.u32 %s31, 1
        %s249 = scalar_lea.sflag [#allocation3], %s248
        %s250 = sand.u32 %s31, 1
        %s251 = smul.addr %s250, 32
        %s252 = scalar_lea.vmem [#allocation2], %s251
        %p253 = pneg %p44
        %p254 = pneg %p41
        %p255 = pneg %p65
        %p256 = pneg %p62
        %p257 = pneg %p86
        %p258 = pneg %p83
        %p259 = pneg %p107
        %p260 = pneg %p104
        %p261 = pneg %p133
        %p262 = pneg %p130
        %s263 = sand.u32 %s120, 1
        %s264 = scalar_lea.sflag [#allocation4], %s263
        %s265 = sand.u32 %s120, 1
        %s266 = smul.addr %s265, 64
        %s267 = scalar_lea.vmem [#allocation10], %s266
        %s268 = smul.u32 8, %s23
        %s269 = smul.u32 8, %s23
        %v270 = vld [vmem:[%s227] sm:$0xf]
        %v271 = vld [vmem:[%s227 + $0x4] sm:$0xf]
        %v272 = vld [vmem:[%s227 + $0x8] sm:$0xf]
        %v273 = vld [vmem:[%s227 + $0xc] sm:$0xf]
        %v274 = vld [vmem:[%s227 + $0x10] sm:$0xf]
        %v275 = vld [vmem:[%s227 + $0x14] sm:$0xf]
        %v276 = vld [vmem:[%s227 + $0x18] sm:$0xf]
        %v277 = vld [vmem:[%s227 + $0x1c] sm:$0xf]
        %v278 = vld [vmem:[#allocation5] sm:$0xff]
        %v279 = vld [vmem:[#allocation5 + $0x8] sm:$0xff]
        %v280 = vld [vmem:[#allocation5 + $0x10] sm:$0xff]
        %v281 = vld [vmem:[#allocation5 + $0x18] sm:$0xff]
        %v282 = vld [vmem:[#allocation5 + $0x20] sm:$0xff]
        %v283 = vld [vmem:[#allocation5 + $0x28] sm:$0xff]
        %v284 = vld [vmem:[#allocation5 + $0x30] sm:$0xff]
        %v285 = vld [vmem:[#allocation5 + $0x38] sm:$0xff]
        %v286 = vld [vmem:[#allocation5 + $0x40] sm:$0xff]
        %v287 = vld [vmem:[#allocation5 + $0x48] sm:$0xff]
        %v288 = vld [vmem:[#allocation5 + $0x50] sm:$0xff]
        %v289 = vld [vmem:[#allocation5 + $0x58] sm:$0xff]
        %v290 = vld [vmem:[#allocation5 + $0x60] sm:$0xff]
        %v291 = vld [vmem:[#allocation5 + $0x68] sm:$0xff]
        %v292 = vld [vmem:[#allocation5 + $0x70] sm:$0xff]
        %v293 = vld [vmem:[#allocation5 + $0x78] sm:$0xff]
        %v302 = vunpack.c.l.b16 %v270
        %v303 = vunpack.c.l.b16 %v271
        %v304 = vunpack.c.l.b16 %v272
        %v305 = vunpack.c.l.b16 %v273
        %v306 = vunpack.c.l.b16 %v274
        %v307 = vunpack.c.l.b16 %v275
        %v308 = vunpack.c.l.b16 %v276
        %v309 = vunpack.c.l.b16 %v277
        %v310 = vpack.c.b16 %v303, %v302
        %v311 = vpack.c.b16 %v305, %v304
        %v312 = vpack.c.b16 %v307, %v306
        %v313 = vpack.c.b16 %v309, %v308
        %v334 = vunpack.c.l.b16 %v278
        %v335 = vunpack.c.h.b16 %v278
        %v336 = vunpack.c.l.b16 %v279
        %v337 = vunpack.c.h.b16 %v279
        %v338 = vunpack.c.l.b16 %v280
        %v339 = vunpack.c.h.b16 %v280
        %v340 = vunpack.c.l.b16 %v281
        %v341 = vunpack.c.h.b16 %v281
        %v342 = vunpack.c.l.b16 %v282
        %v343 = vunpack.c.h.b16 %v282
        %v344 = vunpack.c.l.b16 %v283
        %v345 = vunpack.c.h.b16 %v283
        %v346 = vunpack.c.l.b16 %v284
        %v347 = vunpack.c.h.b16 %v284
        %v348 = vunpack.c.l.b16 %v285
        %v349 = vunpack.c.h.b16 %v285
        %v350 = vunpack.c.l.b16 %v286
        %v351 = vunpack.c.h.b16 %v286
        %v352 = vunpack.c.l.b16 %v287
        %v353 = vunpack.c.h.b16 %v287
        %v354 = vunpack.c.l.b16 %v288
        %v355 = vunpack.c.h.b16 %v288
        %v356 = vunpack.c.l.b16 %v289
        %v357 = vunpack.c.h.b16 %v289
        %v358 = vunpack.c.l.b16 %v290
        %v359 = vunpack.c.h.b16 %v290
        %v360 = vunpack.c.l.b16 %v291
        %v361 = vunpack.c.h.b16 %v291
        %v362 = vunpack.c.l.b16 %v292
        %v363 = vunpack.c.h.b16 %v292
        %v364 = vunpack.c.l.b16 %v293
        %v365 = vunpack.c.h.b16 %v293
        %v366 = vpack.c.b16 %v336, %v334
        %v367 = vpack.c.b16 %v337, %v335
        %v368 = vpack.c.b16 %v340, %v338
        %v369 = vpack.c.b16 %v341, %v339
        %v370 = vpack.c.b16 %v344, %v342
        %v371 = vpack.c.b16 %v345, %v343
        %v372 = vpack.c.b16 %v348, %v346
        %v373 = vpack.c.b16 %v349, %v347
        %v374 = vpack.c.b16 %v352, %v350
        %v375 = vpack.c.b16 %v353, %v351
        %v376 = vpack.c.b16 %v356, %v354
        %v377 = vpack.c.b16 %v357, %v355
        %v378 = vpack.c.b16 %v360, %v358
        %v379 = vpack.c.b16 %v361, %v359
        %v380 = vpack.c.b16 %v364, %v362
        %v381 = vpack.c.b16 %v365, %v363
        %398 = vmatpush.bf16.msra.mxu0 %v380
        %399 = vmatpush.bf16.msra.mxu0 %v378
        %400 = vmatpush.bf16.msra.mxu0 %v376
        %401 = vmatpush.bf16.msra.mxu0 %v374
        %402 = vmatpush.bf16.msra.mxu0 %v372
        %403 = vmatpush.bf16.msra.mxu0 %v370
        %404 = vmatpush.bf16.msra.mxu0 %v368
        %405 = vmatpush.bf16.msra.mxu0 %v366
        %406 = vmatmul.bf16.gmra.mxu0 %v310
        %v407 = vpop.f32.mrf.mxu0
        %v408 = vadd.f32 0.0, %v407
        %v409 = vpop.f32.mrf.mxu0
        %v410 = vadd.f32 0.0, %v409
        %411 = vmatmul.bf16.gmra.mxu0 %v311
        %v412 = vpop.f32.mrf.mxu0
        %v413 = vadd.f32 0.0, %v412
        %v414 = vpop.f32.mrf.mxu0
        %v415 = vadd.f32 0.0, %v414
        %416 = vmatmul.bf16.gmra.mxu0 %v312
        %v417 = vpop.f32.mrf.mxu0
        %v418 = vadd.f32 0.0, %v417
        %v419 = vpop.f32.mrf.mxu0
        %v420 = vadd.f32 0.0, %v419
        %421 = vmatmul.bf16.gmra.mxu0 %v313
        %v422 = vpop.f32.mrf.mxu0
        %v423 = vadd.f32 0.0, %v422
        %v424 = vpop.f32.mrf.mxu0
        %v425 = vadd.f32 0.0, %v424
        %426 = vdwg.mxu0
        %427 = vmatpush.bf16.msra.mxu0 %v381
        %428 = vmatpush.bf16.msra.mxu0 %v379
        %429 = vmatpush.bf16.msra.mxu0 %v377
        %430 = vmatpush.bf16.msra.mxu0 %v375
        %431 = vmatpush.bf16.msra.mxu0 %v373
        %432 = vmatpush.bf16.msra.mxu0 %v371
        %433 = vmatpush.bf16.msra.mxu0 %v369
        %434 = vmatpush.bf16.msra.mxu0 %v367
        %435 = vmatmul.bf16.gmra.mxu0 %v310
        %v436 = vpop.f32.mrf.mxu0
        %v437 = vadd.f32 0.0, %v436
        %v438 = vpop.f32.mrf.mxu0
        %v439 = vadd.f32 0.0, %v438
        %440 = vmatmul.bf16.gmra.mxu0 %v311
        %v441 = vpop.f32.mrf.mxu0
        %v442 = vadd.f32 0.0, %v441
        %v443 = vpop.f32.mrf.mxu0
        %v444 = vadd.f32 0.0, %v443
        %445 = vmatmul.bf16.gmra.mxu0 %v312
        %v446 = vpop.f32.mrf.mxu0
        %v447 = vadd.f32 0.0, %v446
        %v448 = vpop.f32.mrf.mxu0
        %v449 = vadd.f32 0.0, %v448
        %450 = vmatmul.bf16.gmra.mxu0 %v313
        %v451 = vpop.f32.mrf.mxu0
        %v452 = vadd.f32 0.0, %v451
        %v453 = vpop.f32.mrf.mxu0
        %v454 = vadd.f32 0.0, %v453
        %455 = vdwg.mxu0
        %v456 = vmax.f32 %v408, 0.0
        %v457 = vmax.f32 %v437, 0.0
        %v458 = vmax.f32 %v410, 0.0
        %v459 = vmax.f32 %v439, 0.0
        %v460 = vmax.f32 %v413, 0.0
        %v461 = vmax.f32 %v442, 0.0
        %v462 = vmax.f32 %v415, 0.0
        %v463 = vmax.f32 %v444, 0.0
        %v464 = vmax.f32 %v418, 0.0
        %v465 = vmax.f32 %v447, 0.0
        %v466 = vmax.f32 %v420, 0.0
        %v467 = vmax.f32 %v449, 0.0
        %v468 = vmax.f32 %v423, 0.0
        %v469 = vmax.f32 %v452, 0.0
        %v470 = vmax.f32 %v425, 0.0
        %v471 = vmax.f32 %v454, 0.0
        %v472 = vpack.c.bf16 %v458, %v456
        %v473 = vpack.c.bf16 %v459, %v457
        %v474 = vpack.c.bf16 %v462, %v460
        %v475 = vpack.c.bf16 %v463, %v461
        %v476 = vpack.c.bf16 %v466, %v464
        %v477 = vpack.c.bf16 %v467, %v465
        %v478 = vpack.c.bf16 %v470, %v468
        %v479 = vpack.c.bf16 %v471, %v469
        %v480 = vld [vmem:[#allocation7] sm:$0xff]
        %v481 = vld [vmem:[#allocation7 + $0x8] sm:$0xff]
        %v482 = vld [vmem:[#allocation7 + $0x10] sm:$0xff]
        %v483 = vld [vmem:[#allocation7 + $0x18] sm:$0xff]
        %v484 = vld [vmem:[#allocation7 + $0x20] sm:$0xff]
        %v485 = vld [vmem:[#allocation7 + $0x28] sm:$0xff]
        %v486 = vld [vmem:[#allocation7 + $0x30] sm:$0xff]
        %v487 = vld [vmem:[#allocation7 + $0x38] sm:$0xff]
        %v488 = vld [vmem:[#allocation7 + $0x40] sm:$0xff]
        %v489 = vld [vmem:[#allocation7 + $0x48] sm:$0xff]
        %v490 = vld [vmem:[#allocation7 + $0x50] sm:$0xff]
        %v491 = vld [vmem:[#allocation7 + $0x58] sm:$0xff]
        %v492 = vld [vmem:[#allocation7 + $0x60] sm:$0xff]
        %v493 = vld [vmem:[#allocation7 + $0x68] sm:$0xff]
        %v494 = vld [vmem:[#allocation7 + $0x70] sm:$0xff]
        %v495 = vld [vmem:[#allocation7 + $0x78] sm:$0xff]
        %v496 = vld [vmem:[#allocation7 + $0x80] sm:$0xff]
        %v497 = vld [vmem:[#allocation7 + $0x88] sm:$0xff]
        %v498 = vld [vmem:[#allocation7 + $0x90] sm:$0xff]
        %v499 = vld [vmem:[#allocation7 + $0x98] sm:$0xff]
        %v500 = vld [vmem:[#allocation7 + $0xa0] sm:$0xff]
        %v501 = vld [vmem:[#allocation7 + $0xa8] sm:$0xff]
        %v502 = vld [vmem:[#allocation7 + $0xb0] sm:$0xff]
        %v503 = vld [vmem:[#allocation7 + $0xb8] sm:$0xff]
        %v504 = vld [vmem:[#allocation7 + $0xc0] sm:$0xff]
        %v505 = vld [vmem:[#allocation7 + $0xc8] sm:$0xff]
        %v506 = vld [vmem:[#allocation7 + $0xd0] sm:$0xff]
        %v507 = vld [vmem:[#allocation7 + $0xd8] sm:$0xff]
        %v508 = vld [vmem:[#allocation7 + $0xe0] sm:$0xff]
        %v509 = vld [vmem:[#allocation7 + $0xe8] sm:$0xff]
        %v510 = vld [vmem:[#allocation7 + $0xf0] sm:$0xff]
        %v511 = vld [vmem:[#allocation7 + $0xf8] sm:$0xff]
        %v544 = vunpack.c.l.b16 %v480
        %v545 = vunpack.c.h.b16 %v480
        %v546 = vunpack.c.l.b16 %v481
        %v547 = vunpack.c.h.b16 %v481
        %v548 = vunpack.c.l.b16 %v482
        %v549 = vunpack.c.h.b16 %v482
        %v550 = vunpack.c.l.b16 %v483
        %v551 = vunpack.c.h.b16 %v483
        %v552 = vunpack.c.l.b16 %v484
        %v553 = vunpack.c.h.b16 %v484
        %v554 = vunpack.c.l.b16 %v485
        %v555 = vunpack.c.h.b16 %v485
        %v556 = vunpack.c.l.b16 %v486
        %v557 = vunpack.c.h.b16 %v486
        %v558 = vunpack.c.l.b16 %v487
        %v559 = vunpack.c.h.b16 %v487
        %v560 = vunpack.c.l.b16 %v488
        %v561 = vunpack.c.h.b16 %v488
        %v562 = vunpack.c.l.b16 %v489
        %v563 = vunpack.c.h.b16 %v489
        %v564 = vunpack.c.l.b16 %v490
        %v565 = vunpack.c.h.b16 %v490
        %v566 = vunpack.c.l.b16 %v491
        %v567 = vunpack.c.h.b16 %v491
        %v568 = vunpack.c.l.b16 %v492
        %v569 = vunpack.c.h.b16 %v492
        %v570 = vunpack.c.l.b16 %v493
        %v571 = vunpack.c.h.b16 %v493
        %v572 = vunpack.c.l.b16 %v494
        %v573 = vunpack.c.h.b16 %v494
        %v574 = vunpack.c.l.b16 %v495
        %v575 = vunpack.c.h.b16 %v495
        %v576 = vunpack.c.l.b16 %v496
        %v577 = vunpack.c.h.b16 %v496
        %v578 = vunpack.c.l.b16 %v497
        %v579 = vunpack.c.h.b16 %v497
        %v580 = vunpack.c.l.b16 %v498
        %v581 = vunpack.c.h.b16 %v498
        %v582 = vunpack.c.l.b16 %v499
        %v583 = vunpack.c.h.b16 %v499
        %v584 = vunpack.c.l.b16 %v500
        %v585 = vunpack.c.h.b16 %v500
        %v586 = vunpack.c.l.b16 %v501
        %v587 = vunpack.c.h.b16 %v501
        %v588 = vunpack.c.l.b16 %v502
        %v589 = vunpack.c.h.b16 %v502
        %v590 = vunpack.c.l.b16 %v503
        %v591 = vunpack.c.h.b16 %v503
        %v592 = vunpack.c.l.b16 %v504
        %v593 = vunpack.c.h.b16 %v504
        %v594 = vunpack.c.l.b16 %v505
        %v595 = vunpack.c.h.b16 %v505
        %v596 = vunpack.c.l.b16 %v506
        %v597 = vunpack.c.h.b16 %v506
        %v598 = vunpack.c.l.b16 %v507
        %v599 = vunpack.c.h.b16 %v507
        %v600 = vunpack.c.l.b16 %v508
        %v601 = vunpack.c.h.b16 %v508
        %v602 = vunpack.c.l.b16 %v509
        %v603 = vunpack.c.h.b16 %v509
        %v604 = vunpack.c.l.b16 %v510
        %v605 = vunpack.c.h.b16 %v510
        %v606 = vunpack.c.l.b16 %v511
        %v607 = vunpack.c.h.b16 %v511
        %v608 = vpack.c.b16 %v546, %v544
        %v609 = vpack.c.b16 %v547, %v545
        %v610 = vpack.c.b16 %v550, %v548
        %v611 = vpack.c.b16 %v551, %v549
        %v612 = vpack.c.b16 %v554, %v552
        %v613 = vpack.c.b16 %v555, %v553
        %v614 = vpack.c.b16 %v558, %v556
        %v615 = vpack.c.b16 %v559, %v557
        %v616 = vpack.c.b16 %v562, %v560
        %v617 = vpack.c.b16 %v563, %v561
        %v618 = vpack.c.b16 %v566, %v564
        %v619 = vpack.c.b16 %v567, %v565
        %v620 = vpack.c.b16 %v570, %v568
        %v621 = vpack.c.b16 %v571, %v569
        %v622 = vpack.c.b16 %v574, %v572
        %v623 = vpack.c.b16 %v575, %v573
        %v624 = vpack.c.b16 %v578, %v576
        %v625 = vpack.c.b16 %v579, %v577
        %v626 = vpack.c.b16 %v582, %v580
        %v627 = vpack.c.b16 %v583, %v581
        %v628 = vpack.c.b16 %v586, %v584
        %v629 = vpack.c.b16 %v587, %v585
        %v630 = vpack.c.b16 %v590, %v588
        %v631 = vpack.c.b16 %v591, %v589
        %v632 = vpack.c.b16 %v594, %v592
        %v633 = vpack.c.b16 %v595, %v593
        %v634 = vpack.c.b16 %v598, %v596
        %v635 = vpack.c.b16 %v599, %v597
        %v636 = vpack.c.b16 %v602, %v600
        %v637 = vpack.c.b16 %v603, %v601
        %v638 = vpack.c.b16 %v606, %v604
        %v639 = vpack.c.b16 %v607, %v605
        %672 = vmatpush.bf16.msra.mxu0 %v622
        %673 = vmatpush.bf16.msra.mxu0 %v620
        %674 = vmatpush.bf16.msra.mxu0 %v618
        %675 = vmatpush.bf16.msra.mxu0 %v616
        %676 = vmatpush.bf16.msra.mxu0 %v614
        %677 = vmatpush.bf16.msra.mxu0 %v612
        %678 = vmatpush.bf16.msra.mxu0 %v610
        %679 = vmatpush.bf16.msra.mxu0 %v608
        %680 = vmatmul.bf16.gmra.mxu0 %v472
        %v681 = vpop.f32.mrf.mxu0
        %v682 = vadd.f32 0.0, %v681
        %v683 = vpop.f32.mrf.mxu0
        %v684 = vadd.f32 0.0, %v683
        %685 = vmatmul.bf16.gmra.mxu0 %v474
        %v686 = vpop.f32.mrf.mxu0
        %v687 = vadd.f32 0.0, %v686
        %v688 = vpop.f32.mrf.mxu0
        %v689 = vadd.f32 0.0, %v688
        %690 = vmatmul.bf16.gmra.mxu0 %v476
        %v691 = vpop.f32.mrf.mxu0
        %v692 = vadd.f32 0.0, %v691
        %v693 = vpop.f32.mrf.mxu0
        %v694 = vadd.f32 0.0, %v693
        %695 = vmatmul.bf16.gmra.mxu0 %v478
        %v696 = vpop.f32.mrf.mxu0
        %v697 = vadd.f32 0.0, %v696
        %v698 = vpop.f32.mrf.mxu0
        %v699 = vadd.f32 0.0, %v698
        %700 = vdwg.mxu0
        %701 = vmatpush.bf16.msra.mxu0 %v638
        %702 = vmatpush.bf16.msra.mxu0 %v636
        %703 = vmatpush.bf16.msra.mxu0 %v634
        %704 = vmatpush.bf16.msra.mxu0 %v632
        %705 = vmatpush.bf16.msra.mxu0 %v630
        %706 = vmatpush.bf16.msra.mxu0 %v628
        %707 = vmatpush.bf16.msra.mxu0 %v626
        %708 = vmatpush.bf16.msra.mxu0 %v624
        %709 = vmatmul.bf16.gmra.mxu0 %v473
        %v710 = vpop.f32.mrf.mxu0
        %v711 = vadd.f32 %v682, %v710
        %v712 = vpop.f32.mrf.mxu0
        %v713 = vadd.f32 %v684, %v712
        %714 = vmatmul.bf16.gmra.mxu0 %v475
        %v715 = vpop.f32.mrf.mxu0
        %v716 = vadd.f32 %v687, %v715
        %v717 = vpop.f32.mrf.mxu0
        %v718 = vadd.f32 %v689, %v717
        %719 = vmatmul.bf16.gmra.mxu0 %v477
        %v720 = vpop.f32.mrf.mxu0
        %v721 = vadd.f32 %v692, %v720
        %v722 = vpop.f32.mrf.mxu0
        %v723 = vadd.f32 %v694, %v722
        %724 = vmatmul.bf16.gmra.mxu0 %v479
        %v725 = vpop.f32.mrf.mxu0
        %v726 = vadd.f32 %v697, %v725
        %v727 = vpop.f32.mrf.mxu0
        %v728 = vadd.f32 %v699, %v727
        %729 = vdwg.mxu0
        %730 = vmatpush.bf16.msra.mxu0 %v623
        %731 = vmatpush.bf16.msra.mxu0 %v621
        %732 = vmatpush.bf16.msra.mxu0 %v619
        %733 = vmatpush.bf16.msra.mxu0 %v617
        %734 = vmatpush.bf16.msra.mxu0 %v615
        %735 = vmatpush.bf16.msra.mxu0 %v613
        %736 = vmatpush.bf16.msra.mxu0 %v611
        %737 = vmatpush.bf16.msra.mxu0 %v609
        %738 = vmatmul.bf16.gmra.mxu0 %v472
        %v739 = vpop.f32.mrf.mxu0
        %v740 = vadd.f32 0.0, %v739
        %v741 = vpop.f32.mrf.mxu0
        %v742 = vadd.f32 0.0, %v741
        %743 = vmatmul.bf16.gmra.mxu0 %v474
        %v744 = vpop.f32.mrf.mxu0
        %v745 = vadd.f32 0.0, %v744
        %v746 = vpop.f32.mrf.mxu0
        %v747 = vadd.f32 0.0, %v746
        %748 = vmatmul.bf16.gmra.mxu0 %v476
        %v749 = vpop.f32.mrf.mxu0
        %v750 = vadd.f32 0.0, %v749
        %v751 = vpop.f32.mrf.mxu0
        %v752 = vadd.f32 0.0, %v751
        %753 = vmatmul.bf16.gmra.mxu0 %v478
        %v754 = vpop.f32.mrf.mxu0
        %v755 = vadd.f32 0.0, %v754
        %v756 = vpop.f32.mrf.mxu0
        %v757 = vadd.f32 0.0, %v756
        %758 = vdwg.mxu0
        %759 = vmatpush.bf16.msra.mxu0 %v639
        %760 = vmatpush.bf16.msra.mxu0 %v637
        %761 = vmatpush.bf16.msra.mxu0 %v635
        %762 = vmatpush.bf16.msra.mxu0 %v633
        %763 = vmatpush.bf16.msra.mxu0 %v631
        %764 = vmatpush.bf16.msra.mxu0 %v629
        %765 = vmatpush.bf16.msra.mxu0 %v627
        %766 = vmatpush.bf16.msra.mxu0 %v625
        %767 = vmatmul.bf16.gmra.mxu0 %v473
        %v768 = vpop.f32.mrf.mxu0
        %v769 = vadd.f32 %v740, %v768
        %v770 = vpop.f32.mrf.mxu0
        %v771 = vadd.f32 %v742, %v770
        %772 = vmatmul.bf16.gmra.mxu0 %v475
        %v773 = vpop.f32.mrf.mxu0
        %v774 = vadd.f32 %v745, %v773
        %v775 = vpop.f32.mrf.mxu0
        %v776 = vadd.f32 %v747, %v775
        %777 = vmatmul.bf16.gmra.mxu0 %v477
        %v778 = vpop.f32.mrf.mxu0
        %v779 = vadd.f32 %v750, %v778
        %v780 = vpop.f32.mrf.mxu0
        %v781 = vadd.f32 %v752, %v780
        %782 = vmatmul.bf16.gmra.mxu0 %v479
        %v783 = vpop.f32.mrf.mxu0
        %v784 = vadd.f32 %v755, %v783
        %v785 = vpop.f32.mrf.mxu0
        %v786 = vadd.f32 %v757, %v785
        %787 = vdwg.mxu0
        %v788 = vmax.f32 %v711, 0.0
        %v789 = vmax.f32 %v769, 0.0
        %v790 = vmax.f32 %v713, 0.0
        %v791 = vmax.f32 %v771, 0.0
        %v792 = vmax.f32 %v716, 0.0
        %v793 = vmax.f32 %v774, 0.0
        %v794 = vmax.f32 %v718, 0.0
        %v795 = vmax.f32 %v776, 0.0
        %v796 = vmax.f32 %v721, 0.0
        %v797 = vmax.f32 %v779, 0.0
        %v798 = vmax.f32 %v723, 0.0
        %v799 = vmax.f32 %v781, 0.0
        %v800 = vmax.f32 %v726, 0.0
        %v801 = vmax.f32 %v784, 0.0
        %v802 = vmax.f32 %v728, 0.0
        %v803 = vmax.f32 %v786, 0.0
        %v804 = vpack.c.bf16 %v790, %v788
        %v805 = vpack.c.bf16 %v791, %v789
        %v806 = vpack.c.bf16 %v794, %v792
        %v807 = vpack.c.bf16 %v795, %v793
        %v808 = vpack.c.bf16 %v798, %v796
        %v809 = vpack.c.bf16 %v799, %v797
        %v810 = vpack.c.bf16 %v802, %v800
        %v811 = vpack.c.bf16 %v803, %v801
        %v812 = vld [vmem:[#allocation8] sm:$0xf]
        %v813 = vld [vmem:[#allocation8 + $0x4] sm:$0xf]
        %v814 = vld [vmem:[#allocation8 + $0x8] sm:$0xf]
        %v815 = vld [vmem:[#allocation8 + $0xc] sm:$0xf]
        %v816 = vld [vmem:[#allocation8 + $0x10] sm:$0xf]
        %v817 = vld [vmem:[#allocation8 + $0x14] sm:$0xf]
        %v818 = vld [vmem:[#allocation8 + $0x18] sm:$0xf]
        %v819 = vld [vmem:[#allocation8 + $0x1c] sm:$0xf]
        %v820 = vld [vmem:[#allocation8 + $0x20] sm:$0xf]
        %v821 = vld [vmem:[#allocation8 + $0x24] sm:$0xf]
        %v822 = vld [vmem:[#allocation8 + $0x28] sm:$0xf]
        %v823 = vld [vmem:[#allocation8 + $0x2c] sm:$0xf]
        %v824 = vld [vmem:[#allocation8 + $0x30] sm:$0xf]
        %v825 = vld [vmem:[#allocation8 + $0x34] sm:$0xf]
        %v826 = vld [vmem:[#allocation8 + $0x38] sm:$0xf]
        %v827 = vld [vmem:[#allocation8 + $0x3c] sm:$0xf]
        %v828 = vld [vmem:[#allocation8 + $0x40] sm:$0xf]
        %v829 = vld [vmem:[#allocation8 + $0x44] sm:$0xf]
        %v830 = vld [vmem:[#allocation8 + $0x48] sm:$0xf]
        %v831 = vld [vmem:[#allocation8 + $0x4c] sm:$0xf]
        %v832 = vld [vmem:[#allocation8 + $0x50] sm:$0xf]
        %v833 = vld [vmem:[#allocation8 + $0x54] sm:$0xf]
        %v834 = vld [vmem:[#allocation8 + $0x58] sm:$0xf]
        %v835 = vld [vmem:[#allocation8 + $0x5c] sm:$0xf]
        %v836 = vld [vmem:[#allocation8 + $0x60] sm:$0xf]
        %v837 = vld [vmem:[#allocation8 + $0x64] sm:$0xf]
        %v838 = vld [vmem:[#allocation8 + $0x68] sm:$0xf]
        %v839 = vld [vmem:[#allocation8 + $0x6c] sm:$0xf]
        %v840 = vld [vmem:[#allocation8 + $0x70] sm:$0xf]
        %v841 = vld [vmem:[#allocation8 + $0x74] sm:$0xf]
        %v842 = vld [vmem:[#allocation8 + $0x78] sm:$0xf]
        %v843 = vld [vmem:[#allocation8 + $0x7c] sm:$0xf]
        %v876 = vunpack.c.l.b16 %v812
        %v877 = vunpack.c.l.b16 %v813
        %v878 = vunpack.c.l.b16 %v814
        %v879 = vunpack.c.l.b16 %v815
        %v880 = vunpack.c.l.b16 %v816
        %v881 = vunpack.c.l.b16 %v817
        %v882 = vunpack.c.l.b16 %v818
        %v883 = vunpack.c.l.b16 %v819
        %v884 = vunpack.c.l.b16 %v820
        %v885 = vunpack.c.l.b16 %v821
        %v886 = vunpack.c.l.b16 %v822
        %v887 = vunpack.c.l.b16 %v823
        %v888 = vunpack.c.l.b16 %v824
        %v889 = vunpack.c.l.b16 %v825
        %v890 = vunpack.c.l.b16 %v826
        %v891 = vunpack.c.l.b16 %v827
        %v892 = vunpack.c.l.b16 %v828
        %v893 = vunpack.c.l.b16 %v829
        %v894 = vunpack.c.l.b16 %v830
        %v895 = vunpack.c.l.b16 %v831
        %v896 = vunpack.c.l.b16 %v832
        %v897 = vunpack.c.l.b16 %v833
        %v898 = vunpack.c.l.b16 %v834
        %v899 = vunpack.c.l.b16 %v835
        %v900 = vunpack.c.l.b16 %v836
        %v901 = vunpack.c.l.b16 %v837
        %v902 = vunpack.c.l.b16 %v838
        %v903 = vunpack.c.l.b16 %v839
        %v904 = vunpack.c.l.b16 %v840
        %v905 = vunpack.c.l.b16 %v841
        %v906 = vunpack.c.l.b16 %v842
        %v907 = vunpack.c.l.b16 %v843
        %v908 = vpack.c.b16 %v877, %v876
        %v909 = vpack.c.b16 %v879, %v878
        %v910 = vpack.c.b16 %v881, %v880
        %v911 = vpack.c.b16 %v883, %v882
        %v912 = vpack.c.b16 %v885, %v884
        %v913 = vpack.c.b16 %v887, %v886
        %v914 = vpack.c.b16 %v889, %v888
        %v915 = vpack.c.b16 %v891, %v890
        %v916 = vpack.c.b16 %v893, %v892
        %v917 = vpack.c.b16 %v895, %v894
        %v918 = vpack.c.b16 %v897, %v896
        %v919 = vpack.c.b16 %v899, %v898
        %v920 = vpack.c.b16 %v901, %v900
        %v921 = vpack.c.b16 %v903, %v902
        %v922 = vpack.c.b16 %v905, %v904
        %v923 = vpack.c.b16 %v907, %v906
        %940 = vmatpush.bf16.msra.mxu0 %v915
        %941 = vmatpush.bf16.msra.mxu0 %v914
        %942 = vmatpush.bf16.msra.mxu0 %v913
        %943 = vmatpush.bf16.msra.mxu0 %v912
        %944 = vmatpush.bf16.msra.mxu0 %v911
        %945 = vmatpush.bf16.msra.mxu0 %v910
        %946 = vmatpush.bf16.msra.mxu0 %v909
        %947 = vmatpush.bf16.msra.mxu0 %v908
        %948 = vmatmul.bf16.gmra.mxu0 %v804
        %v949 = vpop.f32.mrf.mxu0
        %v950 = vadd.f32 0.0, %v949
        %v951 = vpop.f32.mrf.mxu0
        %v952 = vadd.f32 0.0, %v951
        %953 = vmatmul.bf16.gmra.mxu0 %v806
        %v954 = vpop.f32.mrf.mxu0
        %v955 = vadd.f32 0.0, %v954
        %v956 = vpop.f32.mrf.mxu0
        %v957 = vadd.f32 0.0, %v956
        %958 = vmatmul.bf16.gmra.mxu0 %v808
        %v959 = vpop.f32.mrf.mxu0
        %v960 = vadd.f32 0.0, %v959
        %v961 = vpop.f32.mrf.mxu0
        %v962 = vadd.f32 0.0, %v961
        %963 = vmatmul.bf16.gmra.mxu0 %v810
        %v964 = vpop.f32.mrf.mxu0
        %v965 = vadd.f32 0.0, %v964
        %v966 = vpop.f32.mrf.mxu0
        %v967 = vadd.f32 0.0, %v966
        %968 = vdwg.mxu0
        %969 = vmatpush.bf16.msra.mxu0 %v923
        %970 = vmatpush.bf16.msra.mxu0 %v922
        %971 = vmatpush.bf16.msra.mxu0 %v921
        %972 = vmatpush.bf16.msra.mxu0 %v920
        %973 = vmatpush.bf16.msra.mxu0 %v919
        %974 = vmatpush.bf16.msra.mxu0 %v918
        %975 = vmatpush.bf16.msra.mxu0 %v917
        %976 = vmatpush.bf16.msra.mxu0 %v916
        %977 = vmatmul.bf16.gmra.mxu0 %v805
        %v978 = vpop.f32.mrf.mxu0
        %v979 = vadd.f32 %v950, %v978
        %v980 = vpop.f32.mrf.mxu0
        %v981 = vadd.f32 %v952, %v980
        %982 = vmatmul.bf16.gmra.mxu0 %v807
        %v983 = vpop.f32.mrf.mxu0
        %v984 = vadd.f32 %v955, %v983
        %v985 = vpop.f32.mrf.mxu0
        %v986 = vadd.f32 %v957, %v985
        %987 = vmatmul.bf16.gmra.mxu0 %v809
        %v988 = vpop.f32.mrf.mxu0
        %v989 = vadd.f32 %v960, %v988
        %v990 = vpop.f32.mrf.mxu0
        %v991 = vadd.f32 %v962, %v990
        %992 = vmatmul.bf16.gmra.mxu0 %v811
        %v993 = vpop.f32.mrf.mxu0
        %v994 = vadd.f32 %v965, %v993
        %v995 = vpop.f32.mrf.mxu0
        %v996 = vadd.f32 %v967, %v995
        %997 = vdwg.mxu0
        %998 = vst [vmem:[%s267] sm:$0xff] %v979
        %999 = vst [vmem:[%s267 + $0x8] sm:$0xff] %v981
        %1000 = vst [vmem:[%s267 + $0x10] sm:$0xff] %v984
        %1001 = vst [vmem:[%s267 + $0x18] sm:$0xff] %v986
        %1002 = vst [vmem:[%s267 + $0x20] sm:$0xff] %v989
        %1003 = vst [vmem:[%s267 + $0x28] sm:$0xff] %v991
        %1004 = vst [vmem:[%s267 + $0x30] sm:$0xff] %v994
        %1005 = vst [vmem:[%s267 + $0x38] sm:$0xff] %v996
        %s1006 = sand.u32 %s120, 1
        %s1007 = scalar_lea.sflag [#allocation4], %s1006
        %s1008 = sand.u32 %s120, 1
        %s1009 = smul.addr %s1008, 64
        %s1010 = scalar_lea.vmem [#allocation10], %s1009
        // Predicated region
        $region53: #{tpu_custom_call.1} parent=35 // pred_check
          %p1011 = pneg %p130
        $region54: #{tpu_custom_call.1} parent=35 // pred_check_branch
          %1013 = sbr.rel (%p1011) target = $region56
        $region55: #{tpu_custom_call.1} parent=35 // pred_region
          %s1014 = smul.u32 8, %s23
          %1016 = vsyncadd %s1007, 0
          %s1017 = smul.addr %s1014, 8
          %s1018 = scalar_lea.hbm %s4, %s1017
          %s1019 = sshll.u32 %s1010, 4
          %s1020 = int_to_ptr.vmem [resolvable:$true] %s1019
          %s1021 = sshll.u32 %s1018, 4
          %s1022 = int_to_ptr.hbm [resolvable:$true] %s1021
          %1027 = dma.vmem_to_hbm [thread:$0]  %s1020, 1024, %s1022, %s1007, 128, 128, 8
        $region56: #{tpu_custom_call.1} parent=35 // pred_fallthru
          _
      $region36: #{tpu_custom_call.1} parent=5 // pred_fallthru
        _
      %p1028 = scmp.le.s32.totalorder 2, %s18
      // Predicated region
      $region57: #{tpu_custom_call.1} parent=5 // pred_check
        %p1029 = pneg %p1028
      $region58: #{tpu_custom_call.1} parent=5 // pred_check_branch
        %1031 = sbr.rel (%p1029) target = $region60
      $region59: #{tpu_custom_call.1} parent=5 // pred_region
        %s1032 = ssub.s32 %s18, 2
        // Predicated region
        $region61: #{tpu_custom_call.1} parent=59 // pred_check
          %p1033 = pneg %p136
        $region62: #{tpu_custom_call.1} parent=59 // pred_check_branch
          %1035 = sbr.rel (%p1033) target = $region64
        $region63: #{tpu_custom_call.1} parent=59 // pred_region
          %s1036 = sand.u32 %s121, 1
          %s1037 = scalar_lea.sflag [#allocation4], %s1036
          %s1038 = sand.u32 %s121, 1
          %s1039 = smul.addr %s1038, 64
          %s1040 = scalar_lea.vmem [#allocation10], %s1039
          %1042 = dma.done %s1037, 1024
        $region64: #{tpu_custom_call.1} parent=59 // pred_fallthru
          _
      $region60: #{tpu_custom_call.1} parent=5 // pred_fallthru
        _
    $region6: #{tpu_custom_call.1} parent=1 // loop_footer
      %s22 = sadd.s32 1, %s18
    $region7: #{tpu_custom_call.1} parent=1 // loop_footer_branch
      %17 = sbr.rel target = $region3
    $region8: #{tpu_custom_call.1} parent=1 // loop_exit
      _
    %1043 = vsyncpa [#allocation3], 1
    %s1044 = scalar_lea.sflag [#allocation3], 1
    %1045 = vsyncpa %s1044, 1
    %1046 = vsyncpa [#allocation6], 1
    %1047 = vsyncpa [#allocation9], 1
    %1048 = vsyncpa [#allocation4], 1
    %s1049 = scalar_lea.sflag [#allocation4], 1
    %1050 = vsyncpa %s1049, 1

</llo_original>
